<compile_context>
chip_gen: v5e
topology: v5e:2x2
jax: 0.10.0
libtpu: 0.0.40
codegen_flags: <defaults>
</compile_context>

<pallas_src>
import functools

import jax
import jax.numpy as jnp
from jax.experimental import pallas as pl
from jax.experimental.pallas import tpu as pltpu

TEMPERATURE = 0.5
USE_COSINE_SIMILARITY = True

_MiB = 1024 * 1024


def _pass2_vmem_bytes(t_row, t_col, d, itemsize):
    """Rough VMEM footprint of one pass-2 grid step (double-buffered)."""
    row_bufs = 2 * t_row * d * itemsize       # resident row block
    col_bufs = 2 * t_col * d * itemsize       # streamed column block
    out_bufs = 2 * t_row * 4                  # (t_row, 1) f32 output block
    scratch = 3 * t_row * 4                   # m / l / pos accumulators
    sim_tmp = 4 * t_row * t_col * 4           # f32 sim tile + exp/mask temps
    return row_bufs + col_bufs + out_bufs + scratch + sim_tmp


def _pick_tiles(batch_size, d, itemsize):
    """Column tile <= 256; row tile as large as a ~32 MiB VMEM budget allows.

    Both tiles divide the batch size, so (a) the positive-partner column span
    of a row block is a contiguous, un-wrapped range (exact interval-overlap
    gating in the kernel) and (b) N / T_row is always an even number of row
    blocks, keeping v7x's two TensorCores balanced on the "parallel" axis.
    """
    pow2 = [t for t in (1024, 512, 256, 128, 64, 32, 16, 8)
            if batch_size % t == 0]
    if not pow2:
        # TODO(synk): pad small/ragged batches up to a 128/256-row tile
        # (mask padded columns, drop padded rows from the final sum).
        raise ValueError(f"batch_size must be a multiple of 8, got {batch_size}")
    t_col = next(t for t in pow2 if t <= 256)
    budget = 32 * _MiB
    t_row = pow2[-1]
    for t in pow2:                            # descending: largest that fits
        if _pass2_vmem_bytes(t, t_col, d, itemsize) <= budget:
            t_row = t
            break
    return t_row, t_col


def _normalize_kernel(zjs_ref, zis_ref, out_ref, *, half_blocks, use_cosine,
                      scale):
    i = pl.program_id(0)

    def _norm(x):
        x = x.astype(jnp.float32)
        if use_cosine:
            sumsq = jnp.sum(x * x, axis=-1, keepdims=True)
            # clamp ||x|| at 1e-8 (torch CosineSimilarity eps), via EUP rsqrt.
            x = x * jax.lax.rsqrt(jnp.maximum(sumsq, 1e-16))
        # sqrt(1/temperature) folded here (once per row) instead of scaling
        # every (T_row, T_col) similarity tile in pass 2.
        return (x * scale).astype(out_ref.dtype)

    @pl.when(i < half_blocks)
    def _():
        out_ref[...] = _norm(zjs_ref[...])

    @pl.when(i >= half_blocks)
    def _():
        out_ref[...] = _norm(zis_ref[...])


def _ntxent_tile_kernel(row_ref, col_ref, out_ref, m_sc, l_sc, pos_sc, *,
                        t_row, t_col, b, inv_temp, use_cosine, compute_dtype):
    i = pl.program_id(0)              # row block   (parallel / megacore)
    j = pl.program_id(1)              # col block   (reduction)
    row_start = i * t_row
    col_start = j * t_col

    @pl.when(j == 0)
    def _():
        l_sc[...] = jnp.zeros_like(l_sc)
        pos_sc[...] = jnp.zeros_like(pos_sc)
        if not use_cosine:
            # -inf init is safe: the first column tile is never fully masked
            # (only the self diagonal is masked), so exp(m_prev - m_new) can
            # never be NaN.
            m_sc[...] = jnp.full_like(m_sc, -jnp.inf)

    # (t_row, t_col) similarity tile: bf16 operands, f32 MXU accumulate.
    # 1/temperature is already folded into rn, so no per-tile scale here.
    row = row_ref[...].astype(compute_dtype)
    col = col_ref[...].astype(compute_dtype)
    s = jax.lax.dot_general(row, col, (((1,), (1,)), ((), ())),
                            preferred_element_type=jnp.float32)

    def _global_ids():
        r = row_start + jax.lax.broadcasted_iota(jnp.int32, (t_row, t_col), 0)
        c = col_start + jax.lax.broadcasted_iota(jnp.int32, (t_row, t_col), 1)
        return r, c

    # ---- positive logit: sim[r, (r+B) mod N] lives on a diagonal of the
    # tiles whose columns overlap [(row_start +- B), +t_row).  t_row divides B,
    # so that span never wraps and a plain interval-overlap test is exact.
    # No separate "positives" input => one fewer double-buffered (T_row, D)
    # VMEM buffer and N*D fewer HBM reads.
    pos_start = jnp.where(row_start < b, row_start + b, row_start - b)
    pos_overlap = jnp.logical_and(col_start < pos_start + t_row,
                                  col_start + t_col > pos_start)

    @pl.when(pos_overlap)
    def _():
        r, c = _global_ids()
        pos_col = jnp.where(r < b, r + b, r - b)
        pos_sc[...] += jnp.sum(jnp.where(c == pos_col, s, 0.0),
                               axis=-1, keepdims=True)

    # ---- logsumexp denominator.  Self-similarity entries exist only in tiles
    # whose column span overlaps the row span; all other tiles skip the
    # iota/compare/select entirely.
    diag_overlap = jnp.logical_and(col_start < row_start + t_row,
                                   col_start + t_col > row_start)

    if use_cosine:
        # |s| <= inv_temp (unit rows, scale folded), so a fixed shift replaces
        # the online max: no per-tile row-max, no rescale of the running sum.
        @pl.when(diag_overlap)
        def _():
            r, c = _global_ids()
            e = jnp.where(r == c, 0.0, jnp.exp(s - inv_temp))
            l_sc[...] += jnp.sum(e, axis=-1, keepdims=True)

        @pl.when(jnp.logical_not(diag_overlap))
        def _():
            l_sc[...] += jnp.sum(jnp.exp(s - inv_temp), axis=-1, keepdims=True)
    else:
        # Unbounded dot-product similarity: keep the online max.
        def _online(s_blk):
            m_prev = m_sc[...]
            m_new = jnp.maximum(m_prev, jnp.max(s_blk, axis=-1, keepdims=True))
            alpha = jnp.exp(m_prev - m_new)
            l_sc[...] = alpha * l_sc[...] + jnp.sum(jnp.exp(s_blk - m_new),
                                                    axis=-1, keepdims=True)
            m_sc[...] = m_new

        @pl.when(diag_overlap)
        def _():
            r, c = _global_ids()
            _online(jnp.where(r == c, -1e30, s))

        @pl.when(jnp.logical_not(diag_overlap))
        def _():
            _online(s)

    @pl.when(j == pl.num_programs(1) - 1)
    def _():
        if use_cosine:
            lse = inv_temp + jnp.log(l_sc[...])
        else:
            lse = m_sc[...] + jnp.log(l_sc[...])
        # The positive column stays in the denominator exactly once, matching
        # logits[:, 0] of the reference -- intentional.
        out_ref[...] = lse - pos_sc[...]


def ntxent_loss(zis, zjs, *, temperature=TEMPERATURE,
                use_cosine=USE_COSINE_SIMILARITY):
    assert zis.shape == zjs.shape and zis.ndim == 2
    batch_size, d = zis.shape
    n_total = 2 * batch_size
    inv_temp = float(1.0 / temperature)
    use_cosine = bool(use_cosine)

    # bf16 operands feed the bf16-native MXUs on v6e/v7x (f32 accumulate);
    # rows are unit-normalized so bf16 is safe (~1e-3 rel on the logits).
    # Dot (non-cosine) similarity is unbounded, so it stays in f32.
    compute_dtype = jnp.bfloat16 if use_cosine else jnp.float32
    t_row, t_col = _pick_tiles(batch_size, d,
                               jnp.dtype(compute_dtype).itemsize)

    # Store rn in bf16 too (halves the dominant column-stream HBM traffic);
    # below the 16-row bf16 sublane grain keep the HBM copy in f32 and cast
    # right before the MXU instead.
    if compute_dtype == jnp.bfloat16 and t_row % 16 == 0 and t_col % 16 == 0:
        store_dtype = jnp.bfloat16
    else:
        store_dtype = jnp.float32

    half_blocks = batch_size // t_row          # B / T_row
    num_row_blocks = n_total // t_row          # always even => balanced v7x TCs
    num_col_blocks = n_total // t_col

    # Pass 1: normalized, 1/T-scaled, concatenated representations
    # (no wrapper-side concat; one normalization per row).
    rn = pl.pallas_call(
        functools.partial(_normalize_kernel, half_blocks=half_blocks,
                          use_cosine=use_cosine, scale=float(inv_temp ** 0.5)),
        out_shape=jax.ShapeDtypeStruct((n_total, d), store_dtype),
        grid=(num_row_blocks,),
        in_specs=[
            pl.BlockSpec((t_row, d),
                         lambda i: (jnp.minimum(i, half_blocks - 1), 0)),
            pl.BlockSpec((t_row, d),
                         lambda i: (jnp.maximum(i - half_blocks, 0), 0)),
        ],
        out_specs=pl.BlockSpec((t_row, d), lambda i: (i, 0)),
        compiler_params=pltpu.CompilerParams(
            dimension_semantics=("parallel",)),
    )(zjs, zis)

    # Pass 2: tiled online-logsumexp over (t_row, t_col) similarity tiles.
    # VMEM request derived from the actual tiles (never the whole 64 MiB of a
    # v7x TensorCore): floored at the common 32 MiB default, capped at 48 MiB.
    need = _pass2_vmem_bytes(t_row, t_col, d,
                             jnp.dtype(store_dtype).itemsize)
    vmem_limit = int(min(max(need + need // 2, 32 * _MiB), 48 * _MiB))

    # TODO(synk): on v5e consider pipeline_mode=pl.Buffered(3) on the column
    # BlockSpec to hide the exposed column DMA once the compute is bf16-fast.
    per_row = pl.pallas_call(
        functools.partial(_ntxent_tile_kernel, t_row=t_row, t_col=t_col,
                          b=batch_size, inv_temp=inv_temp,
                          use_cosine=use_cosine, compute_dtype=compute_dtype),
        out_shape=jax.ShapeDtypeStruct((n_total, 1), jnp.float32),
        grid=(num_row_blocks, num_col_blocks),
        in_specs=[
            pl.BlockSpec((t_row, d), lambda i, j: (i, 0)),   # resident rows
            pl.BlockSpec((t_col, d), lambda i, j: (j, 0)),   # streamed cols
        ],
        out_specs=pl.BlockSpec((t_row, 1), lambda i, j: (i, 0)),
        scratch_shapes=[pltpu.VMEM((t_row, 1), jnp.float32),   # running max
                        pltpu.VMEM((t_row, 1), jnp.float32),   # running sum
                        pltpu.VMEM((t_row, 1), jnp.float32)],  # positive logit
        compiler_params=pltpu.CompilerParams(
            dimension_semantics=("parallel", "arbitrary"),
            vmem_limit_bytes=vmem_limit),
    )(rn, rn)

    # Tiny final reduction stays in JAX.
    return jnp.sum(per_row) / jnp.float32(n_total)


def _ntxent_reference(zis, zjs, *, temperature=TEMPERATURE,
                      use_cosine=USE_COSINE_SIMILARITY):
    # pure-JAX reference mirroring the PyTorch module, for a sanity check
    b = zis.shape[0]
    reps = jnp.concatenate([zjs, zis], axis=0).astype(jnp.float32)
    if use_cosine:
        norm = jnp.maximum(jnp.linalg.norm(reps, axis=-1, keepdims=True), 1e-8)
        rn = reps / norm
    else:
        rn = reps
    sim = rn @ rn.T
    n = 2 * b
    l_pos = jnp.diagonal(sim, offset=b)
    r_pos = jnp.diagonal(sim, offset=-b)
    positives = jnp.concatenate([l_pos, r_pos]).reshape(n, 1)
    eye = jnp.eye(n)
    shift = jnp.roll(jnp.eye(n), b, axis=1) + jnp.roll(jnp.eye(n), -b, axis=1)
    keep = (eye + shift) == 0
    negatives = sim[keep].reshape(n, n - 2)
    logits = jnp.concatenate([positives, negatives], axis=1) / temperature
    lse = jax.scipy.special.logsumexp(logits, axis=-1)
    loss = jnp.sum(lse - logits[:, 0])
    return loss / n


if __name__ == "__main__":
    key = jax.random.PRNGKey(0)
    k1, k2 = jax.random.split(key)
    batch, hidden = 8, 32
    zis = jax.random.normal(k1, (batch, hidden), dtype=jnp.float32)
    zjs = jax.random.normal(k2, (batch, hidden), dtype=jnp.float32)

    loss = ntxent_loss(zis, zjs)
    jax.block_until_ready(loss)

    ref = _ntxent_reference(zis, zjs)
    # bf16 MXU operands move the loss off exact-f32 parity by ~1e-3 relative;
    # tolerance loosened accordingly.
    assert jnp.allclose(loss, ref, rtol=5e-2, atol=5e-2), (loss, ref)

    print("KERNEL_OK")
</pallas_src>

<mosaic_0001>
module attributes {stable_mosaic.version = 11 : i64} {
  func.func @_normalize_kernel(%arg0: i32, %arg1: memref<8x32xf32, #tpu.memory_space<vmem>>, %arg2: memref<8x32xf32, #tpu.memory_space<vmem>>, %arg3: memref<8x32xf32, #tpu.memory_space<vmem>>) attributes {dimension_semantics = [#tpu.dimension_semantics<parallel>], iteration_bounds = array<i64: 2>, scalar_prefetch = 0 : i64, scratch_operands = 0 : i64, tpu.core_type = #tpu.core_type<tc>, window_params = [{transform_indices = @transform_0, window_bounds = array<i64: 8, 32>}, {transform_indices = @transform_1, window_bounds = array<i64: 8, 32>}, {transform_indices = @transform_2, window_bounds = array<i64: 8, 32>}]} {
    %c1_i32 = arith.constant 1 : i32
    %0 = arith.cmpi slt, %arg0, %c1_i32 : i32
    %1 = arith.extui %0 : i1 to i32
    %c0_i32 = arith.constant 0 : i32
    %2 = arith.cmpi ne, %1, %c0_i32 : i32
    scf.if %2 {
      %c0 = arith.constant 0 : index
      %c0_2 = arith.constant 0 : index
      %6 = vector.load %arg1[%c0, %c0_2] : memref<8x32xf32, #tpu.memory_space<vmem>>, vector<8x32xf32>
      %7 = arith.mulf %6, %6 : vector<8x32xf32>
      %cst = arith.constant dense<0.000000e+00> : vector<8xf32>
      %8 = vector.multi_reduction <add>, %7, %cst [1] : vector<8x32xf32> to vector<8xf32>
      %9 = vector.shape_cast %8 : vector<8xf32> to vector<8x1xf32>
      %cst_3 = arith.constant 1.000000e-16 : f32
      %10 = vector.broadcast %cst_3 : f32 to vector<8x1xf32>
      %11 = arith.maximumf %9, %10 : vector<8x1xf32>
      %12 = math.rsqrt %11 : vector<8x1xf32>
      %13 = vector.broadcast %12 : vector<8x1xf32> to vector<8x32xf32>
      %14 = arith.mulf %6, %13 : vector<8x32xf32>
      %cst_4 = arith.constant 1.41421354 : f32
      %15 = vector.broadcast %cst_4 : f32 to vector<8x32xf32>
      %16 = arith.mulf %14, %15 : vector<8x32xf32>
      %c0_5 = arith.constant 0 : index
      %c0_6 = arith.constant 0 : index
      %17 = vector.load %arg3[%c0_5, %c0_6] : memref<8x32xf32, #tpu.memory_space<vmem>>, vector<8x32xf32>
      tpu.vector_store %arg3[%c0_5, %c0_6], %16 {strides = array<i32>} : memref<8x32xf32, #tpu.memory_space<vmem>>, vector<8x32xf32>,
    } else {
    }
    %c1_i32_0 = arith.constant 1 : i32
    %3 = arith.cmpi sge, %arg0, %c1_i32_0 : i32
    %4 = arith.extui %3 : i1 to i32
    %c0_i32_1 = arith.constant 0 : i32
    %5 = arith.cmpi ne, %4, %c0_i32_1 : i32
    scf.if %5 {
      %c0 = arith.constant 0 : index
      %c0_2 = arith.constant 0 : index
      %6 = vector.load %arg2[%c0, %c0_2] : memref<8x32xf32, #tpu.memory_space<vmem>>, vector<8x32xf32>
      %7 = arith.mulf %6, %6 : vector<8x32xf32>
      %cst = arith.constant dense<0.000000e+00> : vector<8xf32>
      %8 = vector.multi_reduction <add>, %7, %cst [1] : vector<8x32xf32> to vector<8xf32>
      %9 = vector.shape_cast %8 : vector<8xf32> to vector<8x1xf32>
      %cst_3 = arith.constant 1.000000e-16 : f32
      %10 = vector.broadcast %cst_3 : f32 to vector<8x1xf32>
      %11 = arith.maximumf %9, %10 : vector<8x1xf32>
      %12 = math.rsqrt %11 : vector<8x1xf32>
      %13 = vector.broadcast %12 : vector<8x1xf32> to vector<8x32xf32>
      %14 = arith.mulf %6, %13 : vector<8x32xf32>
      %cst_4 = arith.constant 1.41421354 : f32
      %15 = vector.broadcast %cst_4 : f32 to vector<8x32xf32>
      %16 = arith.mulf %14, %15 : vector<8x32xf32>
      %c0_5 = arith.constant 0 : index
      %c0_6 = arith.constant 0 : index
      %17 = vector.load %arg3[%c0_5, %c0_6] : memref<8x32xf32, #tpu.memory_space<vmem>>, vector<8x32xf32>
      tpu.vector_store %arg3[%c0_5, %c0_6], %16 {strides = array<i32>} : memref<8x32xf32, #tpu.memory_space<vmem>>, vector<8x32xf32>,
    } else {
    }
    return
  }
  func.func @transform_0(%arg0: i32) -> (i32, i32) {
    %c0_i32 = arith.constant 0 : i32
    %0 = arith.minsi %arg0, %c0_i32 : i32
    %c0_i32_0 = arith.constant 0 : i32
    %c0_i32_1 = arith.constant 0 : i32
    return %0, %c0_i32_0 : i32, i32
  }
  func.func @transform_1(%arg0: i32) -> (i32, i32) {
    %c1_i32 = arith.constant 1 : i32
    %0 = arith.subi %arg0, %c1_i32 : i32
    %c0_i32 = arith.constant 0 : i32
    %1 = arith.maxsi %0, %c0_i32 : i32
    %c0_i32_0 = arith.constant 0 : i32
    %c0_i32_1 = arith.constant 0 : i32
    return %1, %c0_i32_0 : i32, i32
  }
  func.func @transform_2(%arg0: i32) -> (i32, i32) {
    %c0_i32 = arith.constant 0 : i32
    %c0_i32_0 = arith.constant 0 : i32
    return %arg0, %c0_i32 : i32, i32
  }
}

</mosaic_0001>

<llo_original>
// kernel: tpu_custom_call.1
$region0: #{tpu_custom_call.1}
  #allocation0 [shape = 'u32[]', space=smem, size = 0x4, offset = 0x4, fixed_abs, tag = 'smem constant byte address 0x4 - core index']
  #allocation1 [shape = 'u32[72,128]{1,0:T(1,128)}', space=vmem, size = 0x9000, scoped, tag = 'internal scratch']
  %s0 = inlined_call_operand.hbm [shape: f32[8,32], index: 0, kind: input, shape index: {}]
  %s1 = inlined_call_operand.hbm [shape: f32[8,32], index: 1, kind: input, shape index: {}]
  %s2 = inlined_call_operand.hbm [shape: f32[16,32], index: 2, kind: output, shape index: {}]
  %s3 = sld [smem:[#allocation0]]
  $region57: #{tpu_custom_call.1} parent=0
    _
  %s5 = ssub.s32 1, %s3
  %s6 = scalar_select 0, %s5, %s3
  $region1: #{tpu_custom_call.1} parent=0
    #allocation2 [shape = 'u8[8192]{0}', space=vmem, size = 0x2000, scoped, tag = 'input window, operand 0']
    #allocation3 [shape = 's32[2]{0}', space=sflag, size = 0x8, scoped, tag = 'scoped memory for tpu_custom_call.1']
    #allocation4 [shape = 's32[2]{0}', space=sflag, size = 0x8, scoped, tag = 'scoped memory for tpu_custom_call.1']
    #allocation5 [shape = 'u8[8192]{0}', space=vmem, size = 0x2000, scoped, tag = 'input window, operand 1']
    #allocation6 [shape = 's32[2]{0}', space=sflag, size = 0x8, scoped, tag = 'scoped memory for tpu_custom_call.1']
    #allocation7 [shape = 'u8[8192]{0}', space=vmem, size = 0x2000, scoped, tag = 'output window, operand 0']
    %7 = vsyncpa [#allocation3], 0
    %s8 = scalar_lea.sflag [#allocation3], 1
    %9 = vsyncpa %s8, 0
    %10 = vsyncpa [#allocation6], 0
    %s11 = scalar_lea.sflag [#allocation6], 1
    %12 = vsyncpa %s11, 0
    %13 = vsyncpa [#allocation4], 0
    %s14 = scalar_lea.sflag [#allocation4], 1
    %15 = vsyncpa %s14, 0
    loop: start=0, step=1, limit=4
    $region2: #{tpu_custom_call.1} parent=1 // loop_pre_header
      _
    $region3: #{tpu_custom_call.1} parent=1 // loop_header
      %s17 = sphi 0, %s21
      %p18 = scmp.ge.s32.totalorder %s17, 4
      %s31 = sphi 0, %s33
      %s34 = sphi 0, %s31
      %s35 = sphi 0, %s34
      %s51 = sphi 0, %s35
      %s63 = sphi 0, %s65
      %s66 = sphi 0, %s63
      %s67 = sphi 0, %s66
      %s83 = sphi 0, %s67
      %s89 = sphi 0, %s91
      %s92 = sphi 0, %s89
      %s93 = sphi 0, %s92
      %s109 = sphi 0, %s93
    $region4: #{tpu_custom_call.1} parent=1 // loop_header_branch
      %20 = sbr.rel (%p18) target = $region8
    $region5: #{tpu_custom_call.1} parent=1 // loop_body
      %s22 = ssub.s32 %s17, 1
      %s23 = ssub.s32 %s17, 2
      %s24 = sadd.s32 %s17, 1
      %p25 = scmp.lt.s32.totalorder %s17, 0
      %s26 = scalar_select %p25, %s17, 0
      %p27 = scmp.lt.s32.totalorder %s24, 0
      %s28 = scalar_select %p27, %s24, 0
      %s29 = ssub.s32 %s26, %s28
      %p30 = scmp.eq.s32.totalorder %s29, 0
      %s32 = sadd.s32 %s31, 1
      %s33 = scalar_select %p30, %s31, %s32
      %p36 = pneg %p30
      %p37 = scmp.eq.s32.totalorder %s17, 1
      %p38 = por %p36, %p37
      %p39 = scmp.ne.s32.totalorder %s31, %s34
      %p40 = scmp.eq.s32.totalorder %s17, 0
      %p41 = por %p39, %p40
      %p42 = scmp.ne.s32.totalorder %s31, %s34
      %p43 = scmp.eq.s32.totalorder %s22, 1
      %p44 = por %p42, %p43
      %p45 = scmp.ne.s32.totalorder %s34, %s35
      %p46 = scmp.eq.s32.totalorder %s22, 0
      %p47 = por %p45, %p46
      %p48 = scmp.ne.s32.totalorder %s34, %s35
      %p49 = scmp.eq.s32.totalorder %s23, 1
      %p50 = por %p48, %p49
      %p52 = scmp.ne.s32.totalorder %s35, %s51
      %p53 = scmp.eq.s32.totalorder %s23, 0
      %p54 = por %p52, %p53
      %s55 = ssub.s32 %s17, 1
      %p56 = scmp.gt.s32.totalorder %s55, 0
      %s57 = scalar_select %p56, %s55, 0
      %s58 = ssub.s32 %s24, 1
      %p59 = scmp.gt.s32.totalorder %s58, 0
      %s60 = scalar_select %p59, %s58, 0
      %s61 = ssub.s32 %s57, %s60
      %p62 = scmp.eq.s32.totalorder %s61, 0
      %s64 = sadd.s32 %s63, 1
      %s65 = scalar_select %p62, %s63, %s64
      %p68 = pneg %p62
      %p69 = scmp.eq.s32.totalorder %s17, 1
      %p70 = por %p68, %p69
      %p71 = scmp.ne.s32.totalorder %s63, %s66
      %p72 = scmp.eq.s32.totalorder %s17, 0
      %p73 = por %p71, %p72
      %p74 = scmp.ne.s32.totalorder %s63, %s66
      %p75 = scmp.eq.s32.totalorder %s22, 1
      %p76 = por %p74, %p75
      %p77 = scmp.ne.s32.totalorder %s66, %s67
      %p78 = scmp.eq.s32.totalorder %s22, 0
      %p79 = por %p77, %p78
      %p80 = scmp.ne.s32.totalorder %s66, %s67
      %p81 = scmp.eq.s32.totalorder %s23, 1
      %p82 = por %p80, %p81
      %p84 = scmp.ne.s32.totalorder %s67, %s83
      %p85 = scmp.eq.s32.totalorder %s23, 0
      %p86 = por %p84, %p85
      %s87 = ssub.s32 %s17, %s24
      %p88 = scmp.eq.s32.totalorder %s87, 0
      %s90 = sadd.s32 %s89, 1
      %s91 = scalar_select %p88, %s89, %s90
      %p94 = pneg %p88
      %p95 = scmp.eq.s32.totalorder %s17, 1
      %p96 = por %p94, %p95
      %p97 = scmp.ne.s32.totalorder %s89, %s92
      %p98 = scmp.eq.s32.totalorder %s17, 0
      %p99 = por %p97, %p98
      %p100 = scmp.ne.s32.totalorder %s89, %s92
      %p101 = scmp.eq.s32.totalorder %s22, 1
      %p102 = por %p100, %p101
      %p103 = scmp.ne.s32.totalorder %s92, %s93
      %p104 = scmp.eq.s32.totalorder %s22, 0
      %p105 = por %p103, %p104
      %p106 = scmp.ne.s32.totalorder %s92, %s93
      %p107 = scmp.eq.s32.totalorder %s23, 1
      %p108 = por %p106, %p107
      %p110 = scmp.ne.s32.totalorder %s93, %s109
      %p111 = scmp.eq.s32.totalorder %s23, 0
      %p112 = por %p110, %p111
      %p113 = scmp.le.s32.totalorder 1, %s17
      %p114 = scmp.lt.s32.totalorder %s17, 3
      %p115 = pnand %p113, %p114
      %p116 = pneg %p115
      // Predicated region
      $region9: #{tpu_custom_call.1} parent=5 // pred_check
        _
      $region10: #{tpu_custom_call.1} parent=5 // pred_check_branch
        %118 = sbr.rel (%p115) target = $region12
      $region11: #{tpu_custom_call.1} parent=5 // pred_region
        %s119 = ssub.s32 %s17, 1
      $region12: #{tpu_custom_call.1} parent=5 // pred_fallthru
        _
      %p120 = scmp.lt.s32.totalorder %s17, 2
      // Predicated region
      $region13: #{tpu_custom_call.1} parent=5 // pred_check
        %p121 = pneg %p120
      $region14: #{tpu_custom_call.1} parent=5 // pred_check_branch
        %123 = sbr.rel (%p121) target = $region16
      $region15: #{tpu_custom_call.1} parent=5 // pred_region
        // Predicated region
        $region17: #{tpu_custom_call.1} parent=15 // pred_check
          %p124 = pneg %p41
        $region18: #{tpu_custom_call.1} parent=15 // pred_check_branch
          %126 = sbr.rel (%p124) target = $region20
        $region19: #{tpu_custom_call.1} parent=15 // pred_region
          %s127 = sand.u32 %s31, 1
          %s128 = scalar_lea.sflag [#allocation3], %s127
          %s129 = sand.u32 %s31, 1
          %s130 = smul.addr %s129, 8
          %s131 = scalar_lea.vmem [#allocation2], %s130
          %p132 = scmp.lt.s32.totalorder %s17, 0
          %s133 = scalar_select %p132, %s17, 0
          %135 = vsyncadd %s128, 0
          %s136 = smul.addr %s133, 8
          %s137 = scalar_lea.hbm %s0, %s136
          %s139 = sshll.u32 %s137, 4
          %s140 = int_to_ptr.hbm [resolvable:$true] %s139
          %s141 = sshll.u32 %s131, 4
          %s142 = int_to_ptr.vmem [resolvable:$true] %s141
          %144 = dma.hbm_to_vmem [thread:$0]  %s140, 128, %s142, %s128
        $region20: #{tpu_custom_call.1} parent=15 // pred_fallthru
          _
        // Predicated region
        $region21: #{tpu_custom_call.1} parent=15 // pred_check
          %p145 = pneg %p73
        $region22: #{tpu_custom_call.1} parent=15 // pred_check_branch
          %147 = sbr.rel (%p145) target = $region24
        $region23: #{tpu_custom_call.1} parent=15 // pred_region
          %s148 = sand.u32 %s63, 1
          %s149 = scalar_lea.sflag [#allocation6], %s148
          %s150 = sand.u32 %s63, 1
          %s151 = smul.addr %s150, 8
          %s152 = scalar_lea.vmem [#allocation5], %s151
          %s153 = ssub.s32 %s17, 1
          %p154 = scmp.gt.s32.totalorder %s153, 0
          %s155 = scalar_select %p154, %s153, 0
          %157 = vsyncadd %s149, 0
          %s158 = smul.addr %s155, 8
          %s159 = scalar_lea.hbm %s1, %s158
          %s161 = sshll.u32 %s159, 4
          %s162 = int_to_ptr.hbm [resolvable:$true] %s161
          %s163 = sshll.u32 %s152, 4
          %s164 = int_to_ptr.vmem [resolvable:$true] %s163
          %166 = dma.hbm_to_vmem [thread:$0]  %s162, 128, %s164, %s149
        $region24: #{tpu_custom_call.1} parent=15 // pred_fallthru
          _
      $region16: #{tpu_custom_call.1} parent=5 // pred_fallthru
        _
      %p167 = scmp.le.s32.totalorder 1, %s17
      %p168 = scmp.lt.s32.totalorder %s17, 3
      %p169 = pnand %p167, %p168
      %p170 = pneg %p169
      // Predicated region
      $region25: #{tpu_custom_call.1} parent=5 // pred_check
        _
      $region26: #{tpu_custom_call.1} parent=5 // pred_check_branch
        %172 = sbr.rel (%p169) target = $region28
      $region27: #{tpu_custom_call.1} parent=5 // pred_region
        %s173 = ssub.s32 %s17, 1
        %s174 = sand.u32 %s34, 1
        %s175 = scalar_lea.sflag [#allocation3], %s174
        %s176 = sand.u32 %s34, 1
        %s177 = smul.addr %s176, 8
        %s178 = scalar_lea.vmem [#allocation2], %s177
        // Predicated region
        $region29: #{tpu_custom_call.1} parent=27 // pred_check
          %p179 = pneg %p47
        $region30: #{tpu_custom_call.1} parent=27 // pred_check_branch
          %181 = sbr.rel (%p179) target = $region32
        $region31: #{tpu_custom_call.1} parent=27 // pred_region
          %183 = dma.done %s175, 128
        $region32: #{tpu_custom_call.1} parent=27 // pred_fallthru
          _
        %s184 = sand.u32 %s66, 1
        %s185 = scalar_lea.sflag [#allocation6], %s184
        %s186 = sand.u32 %s66, 1
        %s187 = smul.addr %s186, 8
        %s188 = scalar_lea.vmem [#allocation5], %s187
        // Predicated region
        $region33: #{tpu_custom_call.1} parent=27 // pred_check
          %p189 = pneg %p79
        $region34: #{tpu_custom_call.1} parent=27 // pred_check_branch
          %191 = sbr.rel (%p189) target = $region36
        $region35: #{tpu_custom_call.1} parent=27 // pred_region
          %193 = dma.done %s185, 128
        $region36: #{tpu_custom_call.1} parent=27 // pred_fallthru
          _
        %s194 = sand.u32 %s34, 1
        %s195 = scalar_lea.sflag [#allocation3], %s194
        %s196 = sand.u32 %s34, 1
        %s197 = smul.addr %s196, 8
        %s198 = scalar_lea.vmem [#allocation2], %s197
        %p199 = pneg %p47
        %p200 = pneg %p44
        %s201 = sand.u32 %s66, 1
        %s202 = scalar_lea.sflag [#allocation6], %s201
        %s203 = sand.u32 %s66, 1
        %s204 = smul.addr %s203, 8
        %s205 = scalar_lea.vmem [#allocation5], %s204
        %p206 = pneg %p79
        %p207 = pneg %p76
        %p208 = pneg %p105
        %p209 = pneg %p102
        %s210 = sand.u32 %s92, 1
        %s211 = scalar_lea.sflag [#allocation4], %s210
        %s212 = sand.u32 %s92, 1
        %s213 = smul.addr %s212, 8
        %s214 = scalar_lea.vmem [#allocation7], %s213
        %p215 = scmp.lt.s32.totalorder %s22, 0
        %s216 = scalar_select %p215, %s22, 0
        %s217 = ssub.s32 %s22, 1
        %p218 = scmp.gt.s32.totalorder %s217, 0
        %s219 = scalar_select %p218, %s217, 0
        %p220 = scmp.lt.s32.totalorder %s22, 1
        // Predicated region
        $region37: #{tpu_custom_call.1} parent=27 // pred_check
          %p221 = pneg %p220
        $region38: #{tpu_custom_call.1} parent=27 // pred_check_branch
          %223 = sbr.rel (%p221) target = $region40
        $region39: #{tpu_custom_call.1} parent=27 // pred_region
          %v224 = vld [vmem:[%s178] sm:$0xff]
          %v225 = vmul.f32 %v224, %v224
          %vm226 = vcmask 261120
          %v227 = vsel %vm226, %v225, 0.0
          %228 = vadd.xlane.f32.xlu0 %v227
          %v229 = vpop.xlane.xlu0 %228
          %v230 = vmax.f32 %v229, 1e-16
          %v231 = vrsqrt.pop %v230
          %v232 = vmul.f32 %v231, %v230
          %v233 = vmul.f32 %v232, %v231
          %v234 = vmul.f32 0.5, %v233
          %v235 = vsub.f32 1.5, %v234
          %v236 = vmul.f32 %v231, %v235
          %vm237 = vweird.f32 %v230
          %vm238 = vweird.f32 %v231
          %vm239 = vmor %vm237, %vm238
          %v240 = vsel %vm239, %v231, %v236
          %v241 = vmul.f32 %v224, %v240
          %v242 = vmul.f32 %v241, 1.4142135
          %243 = vst.msk [vmem:[%s214] sm:$0xff] %vm226, %v242
        $region40: #{tpu_custom_call.1} parent=27 // pred_fallthru
          _
        %p244 = scmp.ge.s32.totalorder %s22, 1
        // Predicated region
        $region41: #{tpu_custom_call.1} parent=27 // pred_check
          %p245 = pneg %p244
        $region42: #{tpu_custom_call.1} parent=27 // pred_check_branch
          %247 = sbr.rel (%p245) target = $region44
        $region43: #{tpu_custom_call.1} parent=27 // pred_region
          %v248 = vld [vmem:[%s188] sm:$0xff]
          %v249 = vmul.f32 %v248, %v248
          %vm250 = vcmask 261120
          %v251 = vsel %vm250, %v249, 0.0
          %252 = vadd.xlane.f32.xlu0 %v251
          %v253 = vpop.xlane.xlu0 %252
          %v254 = vmax.f32 %v253, 1e-16
          %v255 = vrsqrt.pop %v254
          %v256 = vmul.f32 %v255, %v254
          %v257 = vmul.f32 %v256, %v255
          %v258 = vmul.f32 0.5, %v257
          %v259 = vsub.f32 1.5, %v258
          %v260 = vmul.f32 %v255, %v259
          %vm261 = vweird.f32 %v254
          %vm262 = vweird.f32 %v255
          %vm263 = vmor %vm261, %vm262
          %v264 = vsel %vm263, %v255, %v260
          %v265 = vmul.f32 %v248, %v264
          %v266 = vmul.f32 %v265, 1.4142135
          %267 = vst.msk [vmem:[%s214] sm:$0xff] %vm250, %v266
        $region44: #{tpu_custom_call.1} parent=27 // pred_fallthru
          _
        %s268 = sand.u32 %s92, 1
        %s269 = scalar_lea.sflag [#allocation4], %s268
        %s270 = sand.u32 %s92, 1
        %s271 = smul.addr %s270, 8
        %s272 = scalar_lea.vmem [#allocation7], %s271
        // Predicated region
        $region45: #{tpu_custom_call.1} parent=27 // pred_check
          %p273 = pneg %p102
        $region46: #{tpu_custom_call.1} parent=27 // pred_check_branch
          %275 = sbr.rel (%p273) target = $region48
        $region47: #{tpu_custom_call.1} parent=27 // pred_region
          %277 = vsyncadd %s269, 0
          %s278 = smul.addr %s22, 8
          %s279 = scalar_lea.hbm %s2, %s278
          %s281 = sshll.u32 %s272, 4
          %s282 = int_to_ptr.vmem [resolvable:$true] %s281
          %s283 = sshll.u32 %s279, 4
          %s284 = int_to_ptr.hbm [resolvable:$true] %s283
          %286 = dma.vmem_to_hbm [thread:$0]  %s282, 128, %s284, %s269
        $region48: #{tpu_custom_call.1} parent=27 // pred_fallthru
          _
      $region28: #{tpu_custom_call.1} parent=5 // pred_fallthru
        _
      %p287 = scmp.le.s32.totalorder 2, %s17
      // Predicated region
      $region49: #{tpu_custom_call.1} parent=5 // pred_check
        %p288 = pneg %p287
      $region50: #{tpu_custom_call.1} parent=5 // pred_check_branch
        %290 = sbr.rel (%p288) target = $region52
      $region51: #{tpu_custom_call.1} parent=5 // pred_region
        %s291 = ssub.s32 %s17, 2
        // Predicated region
        $region53: #{tpu_custom_call.1} parent=51 // pred_check
          %p292 = pneg %p108
        $region54: #{tpu_custom_call.1} parent=51 // pred_check_branch
          %294 = sbr.rel (%p292) target = $region56
        $region55: #{tpu_custom_call.1} parent=51 // pred_region
          %s295 = sand.u32 %s93, 1
          %s296 = scalar_lea.sflag [#allocation4], %s295
          %s297 = sand.u32 %s93, 1
          %s298 = smul.addr %s297, 8
          %s299 = scalar_lea.vmem [#allocation7], %s298
          %301 = dma.done %s296, 128
        $region56: #{tpu_custom_call.1} parent=51 // pred_fallthru
          _
      $region52: #{tpu_custom_call.1} parent=5 // pred_fallthru
        _
    $region6: #{tpu_custom_call.1} parent=1 // loop_footer
      %s21 = sadd.s32 1, %s17
    $region7: #{tpu_custom_call.1} parent=1 // loop_footer_branch
      %16 = sbr.rel target = $region3
    $region8: #{tpu_custom_call.1} parent=1 // loop_exit
      _
    %302 = vsyncpa [#allocation3], 1
    %s303 = scalar_lea.sflag [#allocation3], 1
    %304 = vsyncpa %s303, 1
    %305 = vsyncpa [#allocation6], 1
    %s306 = scalar_lea.sflag [#allocation6], 1
    %307 = vsyncpa %s306, 1
    %308 = vsyncpa [#allocation4], 1
    %s309 = scalar_lea.sflag [#allocation4], 1
    %310 = vsyncpa %s309, 1

</llo_original>
